<compile_context>
chip_gen: v7x
topology: tpu7x:2x2x1
jax: 0.10.0
libtpu: 0.0.40
codegen_flags: <defaults>
</compile_context>

<pallas_src>
import functools

import jax
import jax.numpy as jnp
from jax.experimental import pallas as pl
from jax.experimental.pallas import tpu as pltpu


# ----------------------------------------------------------------------------
# Kernels
# ----------------------------------------------------------------------------
def _bgam_fused_kernel(x_ref, y_ref, w1_ref, b1_ref, w2t_ref, b2_ref, o_ref,
                       *, inv_hw):
    # x_ref, y_ref, o_ref : (Bt, C, HW)   channels on sublanes, spatial on lanes
    # w1_ref  : (C, Ci)   conv1 weight ("pooled_row @ w1" layout, BN1 folded)
    # b1_ref  : (1, Ci)
    # w2t_ref : (C, Ci)   conv2 weight transposed (BN2 folded)
    # b2_ref  : (C, 1)
    x = x_ref[...]                                                # (Bt, C, HW)

    # Global average pool: lane reduce -> (Bt, C, 1) column. HW is the true
    # (unpadded) extent, so sum * (1/HW) is the exact mean.
    pooled = jnp.sum(x, axis=-1, keepdims=True) * inv_hw          # (Bt, C, 1)

    w1 = w1_ref[...][None, :, :]                                  # (1, C, Ci)
    b1 = b1_ref[...][None, :, :]                                  # (1, 1, Ci)
    w2t = w2t_ref[...][None, :, :]                                # (1, C, Ci)
    b2 = b2_ref[...][None, :, :]                                  # (1, C, 1)

    # 1x1 conv C->Ci (+ folded BN1) + ReLU: broadcast-mul + sublane reduce.
    h = jnp.sum(w1 * pooled, axis=1, keepdims=True) + b1          # (Bt, 1, Ci)
    h = jnp.maximum(h, 0.0)

    # 1x1 conv Ci->C (+ folded BN2) + Sigmoid: back to a (Bt, C, 1) column.
    g = jnp.sum(w2t * h, axis=2, keepdims=True) + b2              # (Bt, C, 1)
    g = jax.nn.sigmoid(g)

    # Fused update: x + g(x) * y, gate broadcast along lanes (in-lane, cheap).
    o_ref[...] = x + g * y_ref[...]


def _bgam_fuse_kernel(g_ref, x_ref, y_ref, o_ref):
    # g_ref : (C, 1), x/y/o : (C, T)  — pure elementwise fuse, HBM-bound.
    o_ref[...] = x_ref[...] + g_ref[...] * y_ref[...]


# ----------------------------------------------------------------------------
# Helpers
# ----------------------------------------------------------------------------
def _vmem_budget_bytes(headroom=6 << 20):
    """Per-core VMEM capacity minus compiler-scratch headroom (chip-aware)."""
    cap = None
    try:
        cap = getattr(pltpu.get_tpu_info(), "vmem_capacity_bytes", None)
    except Exception:  # pragma: no cover - defensive
        cap = None
    if not cap or cap <= 0:
        cap = 64 << 20   # conservative fallback: v7x per-TC physical VMEM
    return max(int(cap) - headroom, 8 << 20)


def _pick_batch_tile(n, per_batch_bytes, budget):
    """Largest divisor of n whose 3x double-buffered blocks fit `budget`,
    stopping once a single operand block reaches ~2 MiB (diminishing returns)."""
    bt = 1
    for d in range(1, n + 1):
        if n % d:
            continue
        if 6 * d * per_batch_bytes > budget:
            break
        bt = d
        if d * per_batch_bytes >= (2 << 20):
            break
    return bt


def fold_bn(w, b, gamma, beta, mean, var, eps=1e-5):
    """Fold eval-mode BatchNorm into a preceding 1x1 conv.
    w: (Cin, Cout) (transposed for x @ w), b: (Cout,)."""
    scale = gamma / jnp.sqrt(var + eps)
    w_f = w * scale[None, :]
    b_f = (b - mean) * scale + beta
    return w_f, b_f


# ----------------------------------------------------------------------------
# Forward
# ----------------------------------------------------------------------------
def bgam_forward(x, y, w1, b1, w2, b2, *, donate_x=False,
                 force_tiled=False, spatial_tile=None):
    """x, y: (N, C, H, W) float32.  w1: (C, Ci), w2: (Ci, C) in "pooled @ w"
    orientation with eval-mode BN already folded.  Returns (N, C, H, W)."""
    N, C, H, W = x.shape
    assert y.shape == x.shape
    HW = H * W
    Ci = w1.shape[1]

    x_f = x.reshape(N, C, HW)
    y_f = y.reshape(N, C, HW)

    budget = _vmem_budget_bytes()
    per_batch_bytes = C * HW * x.dtype.itemsize
    weights_bytes = 2 * (2 * C * Ci + Ci + C) * 4   # double-buffered, tiny

    # Advisory cost: ~12 bytes moved per ~4 flops -> HBM-bandwidth-bound.
    cost = pl.CostEstimate(
        flops=N * (4 * C * HW + 4 * C * Ci),
        transcendentals=N * C,
        bytes_accessed=3 * N * C * HW * 4 + weights_bytes,
    )

    use_fused = (not force_tiled) and (6 * per_batch_bytes + weights_bytes <= budget)

    if use_fused:
        # ---- Fused pool + gate + fuse kernel, batch-packed grid steps. ----
        bt = _pick_batch_tile(N, per_batch_bytes, budget - weights_bytes)

        w1_k = w1                                  # (C, Ci)
        w2t_k = w2.T                               # (C, Ci)
        b1_k = b1.reshape(1, Ci)
        b2_k = b2.reshape(C, 1)

        kernel = functools.partial(_bgam_fused_kernel, inv_hw=1.0 / HW)

        cp_kwargs = dict(dimension_semantics=("parallel",))
        vmem_needed = 6 * bt * per_batch_bytes + weights_bytes
        if vmem_needed > (16 << 20):               # above v5e default scoped limit
            cp_kwargs["vmem_limit_bytes"] = int(budget)

        call_kwargs = {}
        if donate_x:
            call_kwargs["input_output_aliases"] = {0: 0}

        out = pl.pallas_call(
            kernel,
            out_shape=jax.ShapeDtypeStruct((N, C, HW), x.dtype),
            grid_spec=pltpu.PrefetchScalarGridSpec(
                num_scalar_prefetch=0,
                grid=(N // bt,),
                in_specs=[
                    pl.BlockSpec((bt, C, HW), lambda b: (b, 0, 0)),   # x
                    pl.BlockSpec((bt, C, HW), lambda b: (b, 0, 0)),   # y
                    pl.BlockSpec((C, Ci), lambda b: (0, 0)),          # w1
                    pl.BlockSpec((1, Ci), lambda b: (0, 0)),          # b1
                    pl.BlockSpec((C, Ci), lambda b: (0, 0)),          # w2.T
                    pl.BlockSpec((C, 1), lambda b: (0, 0)),           # b2
                ],
                out_specs=pl.BlockSpec((bt, C, HW), lambda b: (b, 0, 0)),
            ),
            compiler_params=pltpu.CompilerParams(**cp_kwargs),
            cost_estimate=cost,
            **call_kwargs,
        )(x_f, y_f, w1_k, b1_k, w2t_k, b2_k)

    else:
        # ---- Large feature maps: tiny gate in plain JAX + tiled fuse. ----
        # Gate is O(N*C*Ci) — microseconds — computed in exact f32.  Cost is one
        # extra read of x for the pool (~33% traffic), far cheaper than not
        # fitting VMEM / serializing on one core.
        hp = jax.lax.Precision.HIGHEST
        pooled = jnp.mean(x_f, axis=-1)                                   # (N, C)
        h = jnp.maximum(jnp.dot(pooled, w1, precision=hp) + b1, 0.0)      # (N, Ci)
        g = jax.nn.sigmoid(jnp.dot(h, w2, precision=hp) + b2)             # (N, C)
        g3 = g[:, :, None].astype(x.dtype)                                # (N, C, 1)

        if spatial_tile is not None:
            T = int(spatial_tile)
        else:
            T = (budget // (6 * C * 4)) // 128 * 128
            T = max(128, min(T, 2048, ((HW + 127) // 128) * 128))
        # TODO(synk): sweep pipeline_mode=pl.Buffered(3) on x/y for small T on v7x.

        cp_kwargs = dict(dimension_semantics=("parallel", "parallel"))
        if 6 * C * T * 4 > (16 << 20):
            cp_kwargs["vmem_limit_bytes"] = int(budget)

        call_kwargs = {}
        if donate_x:
            call_kwargs["input_output_aliases"] = {1: 0}

        out = pl.pallas_call(
            _bgam_fuse_kernel,
            out_shape=jax.ShapeDtypeStruct((N, C, HW), x.dtype),
            grid_spec=pltpu.PrefetchScalarGridSpec(
                num_scalar_prefetch=0,
                grid=(N, pl.cdiv(HW, T)),
                in_specs=[
                    pl.BlockSpec((pl.Squeezed(), C, 1), lambda b, t: (b, 0, 0)),  # g
                    pl.BlockSpec((pl.Squeezed(), C, T), lambda b, t: (b, 0, t)),  # x
                    pl.BlockSpec((pl.Squeezed(), C, T), lambda b, t: (b, 0, t)),  # y
                ],
                out_specs=pl.BlockSpec((pl.Squeezed(), C, T), lambda b, t: (b, 0, t)),
            ),
            compiler_params=pltpu.CompilerParams(**cp_kwargs),
            cost_estimate=cost,
            **call_kwargs,
        )(g3, x_f, y_f)

    return out.reshape(N, C, H, W)


# ----------------------------------------------------------------------------
# Reference + tests
# ----------------------------------------------------------------------------
def reference_forward(x, y, w1, b1, w2, b2):
    """Pure-JAX reference (HIGHEST precision so the reference itself is exact)."""
    hp = jax.lax.Precision.HIGHEST
    pooled = jnp.mean(x, axis=(2, 3))                                   # (N, C)
    h = jnp.maximum(jnp.dot(pooled, w1, precision=hp) + b1, 0.0)        # (N, Ci)
    g = jax.nn.sigmoid(jnp.dot(h, w2, precision=hp) + b2)               # (N, C)
    return x + g[:, :, None, None] * y


def _run_case(key, N, C, H, W, r, **fwd_kwargs):
    Ci = C // r
    kx, ky, kw1, kb1, kw2, kb2 = jax.random.split(key, 6)

    x = jax.random.normal(kx, (N, C, H, W), dtype=jnp.float32)
    y = jax.random.normal(ky, (N, C, H, W), dtype=jnp.float32)

    # Conv weights in "pooled @ w" orientation: (Cin, Cout).
    w1_raw = jax.random.normal(kw1, (C, Ci), dtype=jnp.float32) * 0.1
    b1_raw = jax.random.normal(kb1, (Ci,), dtype=jnp.float32) * 0.1
    w2_raw = jax.random.normal(kw2, (Ci, C), dtype=jnp.float32) * 0.1
    b2_raw = jax.random.normal(kb2, (C,), dtype=jnp.float32) * 0.1

    # Eval-mode BN defaults (gamma=1, beta=0, running_mean=0, running_var=1).
    g1 = jnp.ones((Ci,), jnp.float32); be1 = jnp.zeros((Ci,), jnp.float32)
    m1 = jnp.zeros((Ci,), jnp.float32); v1 = jnp.ones((Ci,), jnp.float32)
    g2 = jnp.ones((C,), jnp.float32); be2 = jnp.zeros((C,), jnp.float32)
    m2 = jnp.zeros((C,), jnp.float32); v2 = jnp.ones((C,), jnp.float32)

    w1, b1 = fold_bn(w1_raw, b1_raw, g1, be1, m1, v1)
    w2, b2 = fold_bn(w2_raw, b2_raw, g2, be2, m2, v2)

    out = jax.block_until_ready(bgam_forward(x, y, w1, b1, w2, b2, **fwd_kwargs))
    ref = reference_forward(x, y, w1, b1, w2, b2)
    assert out.shape == (N, C, H, W)
    assert jnp.allclose(out, ref, atol=1e-5, rtol=1e-5), \
        f"mismatch: max abs err {jnp.max(jnp.abs(out - ref))}"


if __name__ == "__main__":
    key = jax.random.PRNGKey(0)
    k1, k2, k3 = jax.random.split(key, 3)
    # Case 1: fused path, HW multiple of 128 (lane-dense stores), batch-packed.
    _run_case(k1, N=2, C=32, H=16, W=16, r=4)
    # Case 2: fused path, HW=100 -> unpadded full-HW block (tail store masked).
    _run_case(k2, N=2, C=32, H=10, W=10, r=4)
    # Case 3: tiled-fuse path (forced): HW=400, T=128 -> grid (2, 4) incl.
    # a partial tail tile; validates the large-feature-map path end to end.
    _run_case(k3, N=2, C=32, H=20, W=20, r=4, force_tiled=True, spatial_tile=128)
    print("KERNEL_OK")
</pallas_src>

<mosaic_0001>
module attributes {stable_mosaic.version = 11 : i64} {
  func.func @_bgam_fused_kernel(%arg0: i32, %arg1: memref<2x32x256xf32, #tpu.memory_space<vmem>>, %arg2: memref<2x32x256xf32, #tpu.memory_space<vmem>>, %arg3: memref<32x8xf32, #tpu.memory_space<vmem>>, %arg4: memref<1x8xf32, #tpu.memory_space<vmem>>, %arg5: memref<32x8xf32, #tpu.memory_space<vmem>>, %arg6: memref<32x1xf32, #tpu.memory_space<vmem>>, %arg7: memref<2x32x256xf32, #tpu.memory_space<vmem>>) attributes {dimension_semantics = [#tpu.dimension_semantics<parallel>], iteration_bounds = array<i64: 1>, scalar_prefetch = 0 : i64, scratch_operands = 0 : i64, tpu.core_type = #tpu.core_type<tc>, window_params = [{transform_indices = @transform_0, window_bounds = array<i64: 2, 32, 256>}, {transform_indices = @transform_1, window_bounds = array<i64: 2, 32, 256>}, {pipeline_mode = #tpu.pipeline_mode<synchronous>, transform_indices = @transform_2, window_bounds = array<i64: 32, 8>}, {pipeline_mode = #tpu.pipeline_mode<synchronous>, transform_indices = @transform_3, window_bounds = array<i64: 1, 8>}, {pipeline_mode = #tpu.pipeline_mode<synchronous>, transform_indices = @transform_4, window_bounds = array<i64: 32, 8>}, {pipeline_mode = #tpu.pipeline_mode<synchronous>, transform_indices = @transform_5, window_bounds = array<i64: 32, 1>}, {transform_indices = @transform_6, window_bounds = array<i64: 2, 32, 256>}]} {
    %c0 = arith.constant 0 : index
    %c0_0 = arith.constant 0 : index
    %c0_1 = arith.constant 0 : index
    %0 = vector.load %arg1[%c0, %c0_0, %c0_1] : memref<2x32x256xf32, #tpu.memory_space<vmem>>, vector<2x32x256xf32>
    %cst = arith.constant dense<0.000000e+00> : vector<2x32xf32>
    %1 = vector.multi_reduction <add>, %0, %cst [2] : vector<2x32x256xf32> to vector<2x32xf32>
    %2 = vector.shape_cast %1 : vector<2x32xf32> to vector<2x32x1xf32>
    %cst_2 = arith.constant 3.906250e-03 : f32
    %3 = vector.broadcast %cst_2 : f32 to vector<2x32x1xf32>
    %4 = arith.mulf %2, %3 : vector<2x32x1xf32>
    %c0_3 = arith.constant 0 : index
    %c0_4 = arith.constant 0 : index
    %5 = vector.load %arg3[%c0_3, %c0_4] : memref<32x8xf32, #tpu.memory_space<vmem>>, vector<32x8xf32>
    %6 = vector.shape_cast %5 : vector<32x8xf32> to vector<1x32x8xf32>
    %c0_5 = arith.constant 0 : index
    %c0_6 = arith.constant 0 : index
    %7 = vector.load %arg4[%c0_5, %c0_6] : memref<1x8xf32, #tpu.memory_space<vmem>>, vector<1x8xf32>
    %8 = vector.shape_cast %7 : vector<1x8xf32> to vector<1x1x8xf32>
    %c0_7 = arith.constant 0 : index
    %c0_8 = arith.constant 0 : index
    %9 = vector.load %arg5[%c0_7, %c0_8] : memref<32x8xf32, #tpu.memory_space<vmem>>, vector<32x8xf32>
    %10 = vector.shape_cast %9 : vector<32x8xf32> to vector<1x32x8xf32>
    %c0_9 = arith.constant 0 : index
    %c0_10 = arith.constant 0 : index
    %11 = vector.load %arg6[%c0_9, %c0_10] : memref<32x1xf32, #tpu.memory_space<vmem>>, vector<32x1xf32>
    %12 = vector.shape_cast %11 : vector<32x1xf32> to vector<1x32x1xf32>
    %13 = vector.broadcast %6 : vector<1x32x8xf32> to vector<2x32x8xf32>
    %14 = vector.broadcast %4 : vector<2x32x1xf32> to vector<2x32x8xf32>
    %15 = arith.mulf %13, %14 : vector<2x32x8xf32>
    %cst_11 = arith.constant dense<0.000000e+00> : vector<2x8xf32>
    %16 = vector.multi_reduction <add>, %15, %cst_11 [1] : vector<2x32x8xf32> to vector<2x8xf32>
    %17 = vector.shape_cast %16 : vector<2x8xf32> to vector<2x1x8xf32>
    %18 = vector.broadcast %8 : vector<1x1x8xf32> to vector<2x1x8xf32>
    %19 = arith.addf %17, %18 : vector<2x1x8xf32>
    %cst_12 = arith.constant 0.000000e+00 : f32
    %20 = vector.broadcast %cst_12 : f32 to vector<2x1x8xf32>
    %21 = arith.maximumf %19, %20 : vector<2x1x8xf32>
    %22 = vector.broadcast %10 : vector<1x32x8xf32> to vector<2x32x8xf32>
    %23 = vector.broadcast %21 : vector<2x1x8xf32> to vector<2x32x8xf32>
    %24 = arith.mulf %22, %23 : vector<2x32x8xf32>
    %cst_13 = arith.constant dense<0.000000e+00> : vector<2x32xf32>
    %25 = vector.multi_reduction <add>, %24, %cst_13 [2] : vector<2x32x8xf32> to vector<2x32xf32>
    %26 = vector.shape_cast %25 : vector<2x32xf32> to vector<2x32x1xf32>
    %27 = vector.broadcast %12 : vector<1x32x1xf32> to vector<2x32x1xf32>
    %28 = arith.addf %26, %27 : vector<2x32x1xf32>
    %29 = arith.negf %28 : vector<2x32x1xf32>
    %30 = math.exp %29 : vector<2x32x1xf32>
    %cst_14 = arith.constant 1.000000e+00 : f32
    %31 = vector.broadcast %cst_14 : f32 to vector<2x32x1xf32>
    %32 = arith.addf %31, %30 : vector<2x32x1xf32>
    %33 = arith.divf %31, %32 : vector<2x32x1xf32>
    %c0_15 = arith.constant 0 : index
    %c0_16 = arith.constant 0 : index
    %c0_17 = arith.constant 0 : index
    %34 = vector.load %arg2[%c0_15, %c0_16, %c0_17] : memref<2x32x256xf32, #tpu.memory_space<vmem>>, vector<2x32x256xf32>
    %35 = vector.broadcast %33 : vector<2x32x1xf32> to vector<2x32x256xf32>
    %36 = arith.mulf %35, %34 : vector<2x32x256xf32>
    %37 = arith.addf %0, %36 : vector<2x32x256xf32>
    %c0_18 = arith.constant 0 : index
    %c0_19 = arith.constant 0 : index
    %c0_20 = arith.constant 0 : index
    %38 = vector.load %arg7[%c0_18, %c0_19, %c0_20] : memref<2x32x256xf32, #tpu.memory_space<vmem>>, vector<2x32x256xf32>
    tpu.vector_store %arg7[%c0_18, %c0_19, %c0_20], %37 {strides = array<i32>} : memref<2x32x256xf32, #tpu.memory_space<vmem>>, vector<2x32x256xf32>,
    return
  }
  func.func @transform_0(%arg0: i32) -> (i32, i32, i32) {
    %c0_i32 = arith.constant 0 : i32
    %c0_i32_0 = arith.constant 0 : i32
    %c0_i32_1 = arith.constant 0 : i32
    return %arg0, %c0_i32, %c0_i32_0 : i32, i32, i32
  }
  func.func @transform_1(%arg0: i32) -> (i32, i32, i32) {
    %c0_i32 = arith.constant 0 : i32
    %c0_i32_0 = arith.constant 0 : i32
    %c0_i32_1 = arith.constant 0 : i32
    return %arg0, %c0_i32, %c0_i32_0 : i32, i32, i32
  }
  func.func @transform_2(%arg0: i32) -> (i32, i32) {
    %c0_i32 = arith.constant 0 : i32
    %c0_i32_0 = arith.constant 0 : i32
    %c0_i32_1 = arith.constant 0 : i32
    return %c0_i32, %c0_i32_0 : i32, i32
  }
  func.func @transform_3(%arg0: i32) -> (i32, i32) {
    %c0_i32 = arith.constant 0 : i32
    %c0_i32_0 = arith.constant 0 : i32
    %c0_i32_1 = arith.constant 0 : i32
    return %c0_i32, %c0_i32_0 : i32, i32
  }
  func.func @transform_4(%arg0: i32) -> (i32, i32) {
    %c0_i32 = arith.constant 0 : i32
    %c0_i32_0 = arith.constant 0 : i32
    %c0_i32_1 = arith.constant 0 : i32
    return %c0_i32, %c0_i32_0 : i32, i32
  }
  func.func @transform_5(%arg0: i32) -> (i32, i32) {
    %c0_i32 = arith.constant 0 : i32
    %c0_i32_0 = arith.constant 0 : i32
    %c0_i32_1 = arith.constant 0 : i32
    return %c0_i32, %c0_i32_0 : i32, i32
  }
  func.func @transform_6(%arg0: i32) -> (i32, i32, i32) {
    %c0_i32 = arith.constant 0 : i32
    %c0_i32_0 = arith.constant 0 : i32
    %c0_i32_1 = arith.constant 0 : i32
    return %arg0, %c0_i32, %c0_i32_0 : i32, i32, i32
  }
}

</mosaic_0001>

<llo_original>
// kernel: tpu_custom_call.1
$region0: #{tpu_custom_call.1}
  #allocation0 [shape = 'u32[]', space=smem, size = 0x4, offset = 0x4, fixed_abs, tag = 'smem constant byte address 0x4 - core index']
  #allocation1 [shape = 'u32[144,128]{1,0:T(1,128)}', space=vmem, size = 0x12000, scoped, tag = 'internal scratch']
  %s0 = inlined_call_operand.hbm [shape: f32[2,32,256], index: 0, kind: input, shape index: {}]
  %s1 = inlined_call_operand.hbm [shape: f32[2,32,256], index: 1, kind: input, shape index: {}]
  %s2 = inlined_call_operand.vmem [shape: f32[32,8], index: 2, kind: input, shape index: {}]
  %s3 = inlined_call_operand.vmem [shape: f32[1,8], index: 3, kind: input, shape index: {}]
  %s4 = inlined_call_operand.vmem [shape: f32[32,8], index: 4, kind: input, shape index: {}]
  %s5 = inlined_call_operand.vmem [shape: f32[32,1], index: 5, kind: input, shape index: {}]
  %s6 = inlined_call_operand.hbm [shape: f32[2,32,256], index: 6, kind: output, shape index: {}]
  %s7 = sld [smem:[#allocation0]]
  $region42: #{tpu_custom_call.1} parent=0
    _
  %s9 = ssub.s32 1, %s7
  %s10 = scalar_select 0, %s9, %s7
  $region1: #{tpu_custom_call.1} parent=0
    #allocation2 [shape = 'u8[65536]{0}', space=vmem, size = 0x10000, scoped, tag = 'input window, operand 0, single buffered']
    #allocation3 [shape = 's32[1]{0}', space=sflag, size = 0x4, scoped, tag = 'scoped memory for tpu_custom_call.1']
    #allocation4 [shape = 's32[1]{0}', space=sflag, size = 0x4, scoped, tag = 'scoped memory for tpu_custom_call.1']
    #allocation5 [shape = 'u8[65536]{0}', space=vmem, size = 0x10000, scoped, tag = 'input window, operand 1, single buffered']
    #allocation6 [shape = 's32[1]{0}', space=sflag, size = 0x4, scoped, tag = 'scoped memory for tpu_custom_call.1']
    #allocation7 [shape = 'u8[65536]{0}', space=vmem, size = 0x10000, scoped, tag = 'output window, operand 0, single buffered']
    %11 = vsyncpa [#allocation3], 0
    %12 = vsyncpa [#allocation6], 0
    %13 = vsyncpa [#allocation4], 0
    // Predicated region
    $region2: #{tpu_custom_call.1} parent=1 // pred_check
      _
    $region3: #{tpu_custom_call.1} parent=1 // pred_check_branch
      %15 = sbr.rel (0) target = $region5
    $region4: #{tpu_custom_call.1} parent=1 // pred_region
      %s17 = ssub.s32 2048, 2048
      %18 = vsyncadd [#allocation3], %s17
      %s19 = sshll.u32 [#allocation2], 4
      %s20 = int_to_ptr.vmem [resolvable:$true] %s19
      %25 = dma.hbm_to_vmem [thread:$0]  %s0, 2048, %s20, [#allocation3], 256, 256, 16
    $region5: #{tpu_custom_call.1} parent=1 // pred_fallthru
      _
    // Predicated region
    $region6: #{tpu_custom_call.1} parent=1 // pred_check
      _
    $region7: #{tpu_custom_call.1} parent=1 // pred_check_branch
      %27 = sbr.rel (0) target = $region9
    $region8: #{tpu_custom_call.1} parent=1 // pred_region
      %s29 = ssub.s32 2048, 2048
      %30 = vsyncadd [#allocation6], %s29
      %s31 = sshll.u32 [#allocation5], 4
      %s32 = int_to_ptr.vmem [resolvable:$true] %s31
      %37 = dma.hbm_to_vmem [thread:$0]  %s1, 2048, %s32, [#allocation6], 256, 256, 16
    $region9: #{tpu_custom_call.1} parent=1 // pred_fallthru
      _
    // Predicated region
    $region10: #{tpu_custom_call.1} parent=1 // pred_check
      _
    $region11: #{tpu_custom_call.1} parent=1 // pred_check_branch
      %39 = sbr.rel (0) target = $region13
    $region12: #{tpu_custom_call.1} parent=1 // pred_region
      _
    $region13: #{tpu_custom_call.1} parent=1 // pred_fallthru
      _
    // Predicated region
    $region14: #{tpu_custom_call.1} parent=1 // pred_check
      _
    $region15: #{tpu_custom_call.1} parent=1 // pred_check_branch
      %41 = sbr.rel (0) target = $region17
    $region16: #{tpu_custom_call.1} parent=1 // pred_region
      _
    $region17: #{tpu_custom_call.1} parent=1 // pred_fallthru
      _
    // Predicated region
    $region18: #{tpu_custom_call.1} parent=1 // pred_check
      _
    $region19: #{tpu_custom_call.1} parent=1 // pred_check_branch
      %43 = sbr.rel (0) target = $region21
    $region20: #{tpu_custom_call.1} parent=1 // pred_region
      _
    $region21: #{tpu_custom_call.1} parent=1 // pred_fallthru
      _
    // Predicated region
    $region22: #{tpu_custom_call.1} parent=1 // pred_check
      _
    $region23: #{tpu_custom_call.1} parent=1 // pred_check_branch
      %45 = sbr.rel (0) target = $region25
    $region24: #{tpu_custom_call.1} parent=1 // pred_region
      _
    $region25: #{tpu_custom_call.1} parent=1 // pred_fallthru
      _
    // Predicated region
    $region26: #{tpu_custom_call.1} parent=1 // pred_check
      _
    $region27: #{tpu_custom_call.1} parent=1 // pred_check_branch
      %47 = sbr.rel (0) target = $region29
    $region28: #{tpu_custom_call.1} parent=1 // pred_region
      %48 = dma.done [#allocation3], 2048
    $region29: #{tpu_custom_call.1} parent=1 // pred_fallthru
      _
    // Predicated region
    $region30: #{tpu_custom_call.1} parent=1 // pred_check
      _
    $region31: #{tpu_custom_call.1} parent=1 // pred_check_branch
      %50 = sbr.rel (0) target = $region33
    $region32: #{tpu_custom_call.1} parent=1 // pred_region
      %51 = dma.done [#allocation6], 2048
    $region33: #{tpu_custom_call.1} parent=1 // pred_fallthru
      _
    %v52 = vld [vmem:[#allocation2] sm:$0xff]
    %v53 = vld [vmem:[#allocation2 + $0x8] sm:$0xff]
    %v54 = vld [vmem:[#allocation2 + $0x10] sm:$0xff]
    %v55 = vld [vmem:[#allocation2 + $0x18] sm:$0xff]
    %v56 = vld [vmem:[#allocation2 + $0x20] sm:$0xff]
    %v57 = vld [vmem:[#allocation2 + $0x28] sm:$0xff]
    %v58 = vld [vmem:[#allocation2 + $0x30] sm:$0xff]
    %v59 = vld [vmem:[#allocation2 + $0x38] sm:$0xff]
    %v60 = vld [vmem:[#allocation2 + $0x40] sm:$0xff]
    %v61 = vld [vmem:[#allocation2 + $0x48] sm:$0xff]
    %v62 = vld [vmem:[#allocation2 + $0x50] sm:$0xff]
    %v63 = vld [vmem:[#allocation2 + $0x58] sm:$0xff]
    %v64 = vld [vmem:[#allocation2 + $0x60] sm:$0xff]
    %v65 = vld [vmem:[#allocation2 + $0x68] sm:$0xff]
    %v66 = vld [vmem:[#allocation2 + $0x70] sm:$0xff]
    %v67 = vld [vmem:[#allocation2 + $0x78] sm:$0xff]
    %v68 = vadd.f32 %v52, %v53
    %69 = vadd.xlane.f32.xlu0 %v68
    %v70 = vpop.xlane.xlu0 %69
    %v71 = vadd.f32 %v54, %v55
    %72 = vadd.xlane.f32.xlu0 %v71
    %v73 = vpop.xlane.xlu0 %72
    %v74 = vadd.f32 %v56, %v57
    %75 = vadd.xlane.f32.xlu0 %v74
    %v76 = vpop.xlane.xlu0 %75
    %v77 = vadd.f32 %v58, %v59
    %78 = vadd.xlane.f32.xlu0 %v77
    %v79 = vpop.xlane.xlu0 %78
    %v80 = vadd.f32 %v60, %v61
    %81 = vadd.xlane.f32.xlu0 %v80
    %v82 = vpop.xlane.xlu0 %81
    %v83 = vadd.f32 %v62, %v63
    %84 = vadd.xlane.f32.xlu0 %v83
    %v85 = vpop.xlane.xlu0 %84
    %v86 = vadd.f32 %v64, %v65
    %87 = vadd.xlane.f32.xlu0 %v86
    %v88 = vpop.xlane.xlu0 %87
    %v89 = vadd.f32 %v66, %v67
    %90 = vadd.xlane.f32.xlu0 %v89
    %v91 = vpop.xlane.xlu0 %90
    %v92 = vmul.f32 %v70, 0.00390625
    %v93 = vmul.f32 %v73, 0.00390625
    %v94 = vmul.f32 %v76, 0.00390625
    %v95 = vmul.f32 %v79, 0.00390625
    %v96 = vmul.f32 %v82, 0.00390625
    %v97 = vmul.f32 %v85, 0.00390625
    %v98 = vmul.f32 %v88, 0.00390625
    %v99 = vmul.f32 %v91, 0.00390625
    %v100 = vld [vmem:[%s2] sm:$0xff]
    %v101 = vld [vmem:[%s2 + $0x8] sm:$0xff]
    %v102 = vld [vmem:[%s2 + $0x10] sm:$0xff]
    %v103 = vld [vmem:[%s2 + $0x18] sm:$0xff]
    %v104 = vld [vmem:[%s3] sm:$0x1]
    %v105 = vld [vmem:[%s4] sm:$0xff]
    %v106 = vld [vmem:[%s4 + $0x8] sm:$0xff]
    %v107 = vld [vmem:[%s4 + $0x10] sm:$0xff]
    %v108 = vld [vmem:[%s4 + $0x18] sm:$0xff]
    %v109 = vld [vmem:[%s5] sm:$0xff]
    %v110 = vld [vmem:[%s5 + $0x8] sm:$0xff]
    %v111 = vld [vmem:[%s5 + $0x10] sm:$0xff]
    %v112 = vld [vmem:[%s5 + $0x18] sm:$0xff]
    %v113 = vmul.f32 %v100, %v92
    %v114 = vmul.f32 %v101, %v93
    %v115 = vmul.f32 %v102, %v94
    %v116 = vmul.f32 %v103, %v95
    %v117 = vmul.f32 %v100, %v96
    %v118 = vmul.f32 %v101, %v97
    %v119 = vmul.f32 %v102, %v98
    %v120 = vmul.f32 %v103, %v99
    %vm121 = vcmask 64512
    %v122 = vsel %vm121, %v113, 0.0
    %v123 = vsel %vm121, %v114, 0.0
    %v124 = vadd.f32 %v122, %v123
    %v125 = vsel %vm121, %v115, 0.0
    %v126 = vadd.f32 %v124, %v125
    %v127 = vsel %vm121, %v116, 0.0
    %v128 = vadd.f32 %v126, %v127
    %v129 = vrot.slane %v128, 4
    %v130 = vadd.f32 %v128, %v129
    %v131 = vrot.slane %v130, 2
    %v132 = vadd.f32 %v130, %v131
    %v133 = vrot.slane %v132, 1
    %v134 = vadd.f32 %v132, %v133
    %v135 = vsel %vm121, %v117, 0.0
    %v136 = vsel %vm121, %v118, 0.0
    %v137 = vadd.f32 %v135, %v136
    %v138 = vsel %vm121, %v119, 0.0
    %v139 = vadd.f32 %v137, %v138
    %v140 = vsel %vm121, %v120, 0.0
    %v141 = vadd.f32 %v139, %v140
    %v142 = vrot.slane %v141, 4
    %v143 = vadd.f32 %v141, %v142
    %v144 = vrot.slane %v143, 2
    %v145 = vadd.f32 %v143, %v144
    %v146 = vrot.slane %v145, 1
    %v147 = vadd.f32 %v145, %v146
    %v148 = vadd.f32 %v134, %v104
    %v149 = vadd.f32 %v147, %v104
    %v150 = vmax.f32 %v148, 0.0
    %v151 = vmax.f32 %v149, 0.0
    %v152 = vlaneseq
    %v153 = vshrl.u32 %v152, 7
    %v154 = vsub.s32 0, %v153
    %v155 = vrot.slane %v150, %v154
    %v156 = vlaneseq
    %v157 = vshrl.u32 %v156, 7
    %v158 = vsub.s32 0, %v157
    %v159 = vrot.slane %v151, %v158
    %v160 = vmul.f32 %v105, %v155
    %v161 = vmul.f32 %v106, %v155
    %v162 = vmul.f32 %v107, %v155
    %v163 = vmul.f32 %v108, %v155
    %v164 = vmul.f32 %v105, %v159
    %v165 = vmul.f32 %v106, %v159
    %v166 = vmul.f32 %v107, %v159
    %v167 = vmul.f32 %v108, %v159
    %v168 = vsel %vm121, %v160, 0.0
    %169 = vadd.xlane.f32.xlu0 %v168
    %v170 = vpop.xlane.xlu0 %169
    %v171 = vsel %vm121, %v161, 0.0
    %172 = vadd.xlane.f32.xlu0 %v171
    %v173 = vpop.xlane.xlu0 %172
    %v174 = vsel %vm121, %v162, 0.0
    %175 = vadd.xlane.f32.xlu0 %v174
    %v176 = vpop.xlane.xlu0 %175
    %v177 = vsel %vm121, %v163, 0.0
    %178 = vadd.xlane.f32.xlu0 %v177
    %v179 = vpop.xlane.xlu0 %178
    %v180 = vsel %vm121, %v164, 0.0
    %181 = vadd.xlane.f32.xlu0 %v180
    %v182 = vpop.xlane.xlu0 %181
    %v183 = vsel %vm121, %v165, 0.0
    %184 = vadd.xlane.f32.xlu0 %v183
    %v185 = vpop.xlane.xlu0 %184
    %v186 = vsel %vm121, %v166, 0.0
    %187 = vadd.xlane.f32.xlu0 %v186
    %v188 = vpop.xlane.xlu0 %187
    %v189 = vsel %vm121, %v167, 0.0
    %190 = vadd.xlane.f32.xlu0 %v189
    %v191 = vpop.xlane.xlu0 %190
    %v192 = vadd.f32 %v170, %v109
    %v193 = vadd.f32 %v173, %v110
    %v194 = vadd.f32 %v176, %v111
    %v195 = vadd.f32 %v179, %v112
    %v196 = vadd.f32 %v182, %v109
    %v197 = vadd.f32 %v185, %v110
    %v198 = vadd.f32 %v188, %v111
    %v199 = vadd.f32 %v191, %v112
    %v200 = vxor.u32 %v192, 2147483648
    %v201 = vxor.u32 %v193, 2147483648
    %v202 = vxor.u32 %v194, 2147483648
    %v203 = vxor.u32 %v195, 2147483648
    %v204 = vxor.u32 %v196, 2147483648
    %v205 = vxor.u32 %v197, 2147483648
    %v206 = vxor.u32 %v198, 2147483648
    %v207 = vxor.u32 %v199, 2147483648
    %v208 = vmul.f32 %v200, 1.442695
    %v209 = vpow.pop %v208
    %v210 = vmul.f32 %v201, 1.442695
    %v211 = vpow.pop %v210
    %v212 = vmul.f32 %v202, 1.442695
    %v213 = vpow.pop %v212
    %v214 = vmul.f32 %v203, 1.442695
    %v215 = vpow.pop %v214
    %v216 = vmul.f32 %v204, 1.442695
    %v217 = vpow.pop %v216
    %v218 = vmul.f32 %v205, 1.442695
    %v219 = vpow.pop %v218
    %v220 = vmul.f32 %v206, 1.442695
    %v221 = vpow.pop %v220
    %v222 = vmul.f32 %v207, 1.442695
    %v223 = vpow.pop %v222
    %v224 = vadd.f32 %v209, 1.0
    %v225 = vadd.f32 %v211, 1.0
    %v226 = vadd.f32 %v213, 1.0
    %v227 = vadd.f32 %v215, 1.0
    %v228 = vadd.f32 %v217, 1.0
    %v229 = vadd.f32 %v219, 1.0
    %v230 = vadd.f32 %v221, 1.0
    %v231 = vadd.f32 %v223, 1.0
    %v232 = vrcp.pop %v224
    %v233 = vmul.f32 1.0, %v232
    %v234 = vrcp.pop %v225
    %v235 = vmul.f32 1.0, %v234
    %v236 = vrcp.pop %v226
    %v237 = vmul.f32 1.0, %v236
    %v238 = vrcp.pop %v227
    %v239 = vmul.f32 1.0, %v238
    %v240 = vrcp.pop %v228
    %v241 = vmul.f32 1.0, %v240
    %v242 = vrcp.pop %v229
    %v243 = vmul.f32 1.0, %v242
    %v244 = vrcp.pop %v230
    %v245 = vmul.f32 1.0, %v244
    %v246 = vrcp.pop %v231
    %v247 = vmul.f32 1.0, %v246
    %v248 = vld [vmem:[#allocation5] sm:$0xff]
    %v249 = vld [vmem:[#allocation5 + $0x8] sm:$0xff]
    %v250 = vld [vmem:[#allocation5 + $0x10] sm:$0xff]
    %v251 = vld [vmem:[#allocation5 + $0x18] sm:$0xff]
    %v252 = vld [vmem:[#allocation5 + $0x20] sm:$0xff]
    %v253 = vld [vmem:[#allocation5 + $0x28] sm:$0xff]
    %v254 = vld [vmem:[#allocation5 + $0x30] sm:$0xff]
    %v255 = vld [vmem:[#allocation5 + $0x38] sm:$0xff]
    %v256 = vld [vmem:[#allocation5 + $0x40] sm:$0xff]
    %v257 = vld [vmem:[#allocation5 + $0x48] sm:$0xff]
    %v258 = vld [vmem:[#allocation5 + $0x50] sm:$0xff]
    %v259 = vld [vmem:[#allocation5 + $0x58] sm:$0xff]
    %v260 = vld [vmem:[#allocation5 + $0x60] sm:$0xff]
    %v261 = vld [vmem:[#allocation5 + $0x68] sm:$0xff]
    %v262 = vld [vmem:[#allocation5 + $0x70] sm:$0xff]
    %v263 = vld [vmem:[#allocation5 + $0x78] sm:$0xff]
    %265 = vset.pattern.permute.xlu0 0
    %266 = vperm.xlu0 %265, %v233
    %v267 = vpop.permute.xlu0 %266
    %270 = vset.pattern.permute.xlu0 0
    %271 = vperm.xlu0 %270, %v235
    %v272 = vpop.permute.xlu0 %271
    %275 = vset.pattern.permute.xlu0 0
    %276 = vperm.xlu0 %275, %v237
    %v277 = vpop.permute.xlu0 %276
    %280 = vset.pattern.permute.xlu0 0
    %281 = vperm.xlu0 %280, %v239
    %v282 = vpop.permute.xlu0 %281
    %285 = vset.pattern.permute.xlu0 0
    %286 = vperm.xlu0 %285, %v241
    %v287 = vpop.permute.xlu0 %286
    %290 = vset.pattern.permute.xlu0 0
    %291 = vperm.xlu0 %290, %v243
    %v292 = vpop.permute.xlu0 %291
    %295 = vset.pattern.permute.xlu0 0
    %296 = vperm.xlu0 %295, %v245
    %v297 = vpop.permute.xlu0 %296
    %300 = vset.pattern.permute.xlu0 0
    %301 = vperm.xlu0 %300, %v247
    %v302 = vpop.permute.xlu0 %301
    %v304 = vmul.f32 %v267, %v248
    %v305 = vmul.f32 %v267, %v249
    %v306 = vmul.f32 %v272, %v250
    %v307 = vmul.f32 %v272, %v251
    %v308 = vmul.f32 %v277, %v252
    %v309 = vmul.f32 %v277, %v253
    %v310 = vmul.f32 %v282, %v254
    %v311 = vmul.f32 %v282, %v255
    %v312 = vmul.f32 %v287, %v256
    %v313 = vmul.f32 %v287, %v257
    %v314 = vmul.f32 %v292, %v258
    %v315 = vmul.f32 %v292, %v259
    %v316 = vmul.f32 %v297, %v260
    %v317 = vmul.f32 %v297, %v261
    %v318 = vmul.f32 %v302, %v262
    %v319 = vmul.f32 %v302, %v263
    %v320 = vadd.f32 %v52, %v304
    %v321 = vadd.f32 %v53, %v305
    %v322 = vadd.f32 %v54, %v306
    %v323 = vadd.f32 %v55, %v307
    %v324 = vadd.f32 %v56, %v308
    %v325 = vadd.f32 %v57, %v309
    %v326 = vadd.f32 %v58, %v310
    %v327 = vadd.f32 %v59, %v311
    %v328 = vadd.f32 %v60, %v312
    %v329 = vadd.f32 %v61, %v313
    %v330 = vadd.f32 %v62, %v314
    %v331 = vadd.f32 %v63, %v315
    %v332 = vadd.f32 %v64, %v316
    %v333 = vadd.f32 %v65, %v317
    %v334 = vadd.f32 %v66, %v318
    %v335 = vadd.f32 %v67, %v319
    %336 = vst [vmem:[#allocation7] sm:$0xff] %v320
    %337 = vst [vmem:[#allocation7 + $0x8] sm:$0xff] %v321
    %338 = vst [vmem:[#allocation7 + $0x10] sm:$0xff] %v322
    %339 = vst [vmem:[#allocation7 + $0x18] sm:$0xff] %v323
    %340 = vst [vmem:[#allocation7 + $0x20] sm:$0xff] %v324
    %341 = vst [vmem:[#allocation7 + $0x28] sm:$0xff] %v325
    %342 = vst [vmem:[#allocation7 + $0x30] sm:$0xff] %v326
    %343 = vst [vmem:[#allocation7 + $0x38] sm:$0xff] %v327
    %344 = vst [vmem:[#allocation7 + $0x40] sm:$0xff] %v328
    %345 = vst [vmem:[#allocation7 + $0x48] sm:$0xff] %v329
    %346 = vst [vmem:[#allocation7 + $0x50] sm:$0xff] %v330
    %347 = vst [vmem:[#allocation7 + $0x58] sm:$0xff] %v331
    %348 = vst [vmem:[#allocation7 + $0x60] sm:$0xff] %v332
    %349 = vst [vmem:[#allocation7 + $0x68] sm:$0xff] %v333
    %350 = vst [vmem:[#allocation7 + $0x70] sm:$0xff] %v334
    %351 = vst [vmem:[#allocation7 + $0x78] sm:$0xff] %v335
    // Predicated region
    $region34: #{tpu_custom_call.1} parent=1 // pred_check
      _
    $region35: #{tpu_custom_call.1} parent=1 // pred_check_branch
      %353 = sbr.rel (0) target = $region37
    $region36: #{tpu_custom_call.1} parent=1 // pred_region
      %s355 = ssub.s32 2048, 2048
      %356 = vsyncadd [#allocation4], %s355
      %s357 = sshll.u32 [#allocation7], 4
      %s358 = int_to_ptr.vmem [resolvable:$true] %s357
      %363 = dma.vmem_to_hbm [thread:$0]  %s358, 2048, %s6, [#allocation4], 256, 256, 16
    $region37: #{tpu_custom_call.1} parent=1 // pred_fallthru
      _
    // Predicated region
    $region38: #{tpu_custom_call.1} parent=1 // pred_check
      _
    $region39: #{tpu_custom_call.1} parent=1 // pred_check_branch
      %365 = sbr.rel (0) target = $region41
    $region40: #{tpu_custom_call.1} parent=1 // pred_region
      %366 = dma.done [#allocation4], 2048
    $region41: #{tpu_custom_call.1} parent=1 // pred_fallthru
      _
    %367 = vsyncpa [#allocation3], 1
    %368 = vsyncpa [#allocation6], 1
    %369 = vsyncpa [#allocation4], 1

</llo_original>
